<compile_context>
chip_gen: v7x
topology: tpu7x:2x2x1
jax: 0.10.0
libtpu: 0.0.40
codegen_flags: <defaults>
</compile_context>

<pallas_src>
import functools

import jax
import jax.numpy as jnp
from jax.experimental import pallas as pl
from jax.experimental.pallas import tpu as pltpu

_EPS = 1e-8
_PALLAS_MIN_ELEMS = 4096           # below this, launch overhead dwarfs the work
_TARGET_TILE_ELEMS = 512 * 1024    # ~2 MiB f32 per input block
_LANE_CANDIDATES = (512, 256, 128)


def _round_up(x, m):
    return ((x + m - 1) // m) * m


def _sublane_quantum(dtype):
    # Native sublane packing: (8,128) f32, (16,128) bf16, (32,128) int8/fp8.
    return {1: 32, 2: 16, 4: 8}.get(jnp.dtype(dtype).itemsize, 8)


def _tensorcores_per_device():
    """2 TensorCores per chip on v7x; v5e/v6e have 1 (split buys nothing there)."""
    try:
        kind = jax.devices()[0].device_kind.lower()
    except Exception:
        return 1
    return 2 if "v7" in kind else 1


def _loss_sums_kernel(p_ref, t_ref, out_ref, *, rows, tile_rows, lane, steps):
    """Accumulate per-lane partial sums of (p-t)^2, |p-t|, |p-t|/(|t|+eps).

    out_ref is a sublane-aligned (8, lane) f32 tile; rows 0..2 hold the three
    sums and rows 3..7 stay zero, so the per-step update is a single fused
    unmasked read-add-write.
    """
    c = pl.program_id(0)
    i = pl.program_id(1)

    @pl.when(i == 0)
    def _init():
        out_ref[...] = jnp.zeros(out_ref.shape, out_ref.dtype)

    p = p_ref[...].astype(jnp.float32)
    t = t_ref[...].astype(jnp.float32)

    def accumulate(p, t):
        d = p - t
        ad = jnp.abs(d)
        denom = jnp.abs(t) + _EPS
        # EUP approximate reciprocal (free slot) + one Newton-Raphson step:
        # much cheaper than a full f32 VALU divide, accurate to ~1e-7 rel.
        r = pl.reciprocal(denom, approx=True)
        r = r * (2.0 - denom * r)
        mape = ad * r
        sq = jnp.sum(d * d, axis=0, keepdims=True)      # (1, lane)
        ab = jnp.sum(ad, axis=0, keepdims=True)         # (1, lane)
        mp = jnp.sum(mape, axis=0, keepdims=True)       # (1, lane)
        # Scatter the three partial rows into a full (8, lane) tile with
        # elementwise selects (no unaligned sublane concatenate needed),
        # then do one fused unmasked RMW on the VMEM-resident output block.
        row_ids8 = jax.lax.broadcasted_iota(jnp.int32, (8, lane), 0)
        upd = jnp.where(row_ids8 == 0, sq,
                        jnp.where(row_ids8 == 1, ab,
                                  jnp.where(row_ids8 == 2, mp, 0.0)))
        out_ref[...] += upd

    if rows % tile_rows == 0:
        # Row count divides the tile: no masking anywhere.
        accumulate(p, t)
    else:
        # Only the globally-last row block is ragged.  Everything except the
        # block index is static, so full tiles take the unmasked path and only
        # the single ragged tile pays for the iota/compare/selects.
        partial_block = rows // tile_rows
        valid = rows - partial_block * tile_rows
        gblock = c * steps + i

        @pl.when(gblock != partial_block)
        def _full():
            accumulate(p, t)

        @pl.when(gblock == partial_block)
        def _ragged():
            row_ids = jax.lax.broadcasted_iota(jnp.int32, (tile_rows, lane), 0)
            m = row_ids < valid
            # Mask the *inputs* so any garbage (even NaN) in the out-of-bounds
            # rows of the DMA'd block contributes exactly zero to all sums
            # (d = 0, |d| = 0, |d|/(0+eps) = 0).
            accumulate(jnp.where(m, p, 0.0), jnp.where(m, t, 0.0))


def _plan(n_total, dtype, max_tile_rows):
    """Pick (lane, rows, tile_rows, num_splits, steps); None -> use XLA fallback."""
    lane = next((c for c in _LANE_CANDIDATES if n_total % c == 0), None)
    if lane is None:
        return None
    rows = n_total // lane
    sub = _sublane_quantum(dtype)
    tile_rows = max(sub, (_TARGET_TILE_ELEMS // lane) // sub * sub)
    if max_tile_rows is not None:                  # test hook / manual tuning
        tile_rows = max(sub, (max_tile_rows // sub) * sub)
    if rows <= tile_rows:
        tile_rows = rows                           # single full-extent block
    nblocks = -(-rows // tile_rows)
    num_splits = 1
    # 2-way split only when the part has 2 TensorCores and each core gets at
    # least one full tile (even block count also avoids fully-OOB blocks).
    if _tensorcores_per_device() >= 2 and nblocks >= 2 and nblocks % 2 == 0:
        num_splits = 2
    steps = nblocks // num_splits
    return lane, rows, tile_rows, num_splits, steps


def _reduction_sums(pred, true, max_tile_rows):
    """Return [sum((p-t)^2), sum(|p-t|), sum(|p-t|/(|t|+eps))] as f32[3]."""
    n_total = pred.size
    lane, rows, tile_rows, num_splits, steps = _plan(n_total, pred.dtype,
                                                     max_tile_rows)
    p2 = pred.reshape(rows, lane)        # free: same size, row-major
    t2 = true.reshape(rows, lane)

    kernel = functools.partial(_loss_sums_kernel, rows=rows,
                               tile_rows=tile_rows, lane=lane, steps=steps)
    in_spec = pl.BlockSpec((tile_rows, lane), lambda c, i: (c * steps + i, 0))
    out_spec = pl.BlockSpec((None, 8, lane), lambda c, i: (c, 0, 0))
    bytes_in = n_total * (jnp.dtype(pred.dtype).itemsize
                          + jnp.dtype(true.dtype).itemsize)

    partials = pl.pallas_call(
        kernel,
        out_shape=jax.ShapeDtypeStruct((num_splits, 8, lane), jnp.float32),
        grid_spec=pltpu.PrefetchScalarGridSpec(
            num_scalar_prefetch=0,
            grid=(num_splits, steps),
            in_specs=[in_spec, in_spec],
            out_specs=out_spec,
        ),
        compiler_params=pltpu.CompilerParams(
            dimension_semantics=("parallel", "arbitrary"),
            vmem_limit_bytes=32 * 1024 * 1024,
        ),
        cost_estimate=pl.CostEstimate(
            flops=12 * n_total,
            transcendentals=n_total,
            bytes_accessed=bytes_in + num_splits * 8 * lane * 4,
        ),
    )(p2, t2)

    # Single tiny cross-lane reduce of the (splits, 8, lane) partial buffer.
    return jnp.sum(partials[:, :3, :], axis=(0, 2))


def _loss_terms(pred, true, max_tile_rows):
    """(mse, mae, mape) means for matched-shape inputs."""
    n_total = pred.size
    use_pallas = (n_total >= _PALLAS_MIN_ELEMS
                  and _plan(n_total, pred.dtype, max_tile_rows) is not None)
    if not use_pallas:
        # Tiny inputs, or flat sizes not divisible by 128: a fused XLA
        # reduction reads each array exactly once from HBM — padding or
        # slicing to feed Pallas would only add traffic.
        p32 = pred.astype(jnp.float32).reshape(-1)
        t32 = true.astype(jnp.float32).reshape(-1)
        d = p32 - t32
        ad = jnp.abs(d)
        return (jnp.mean(d * d), jnp.mean(ad),
                jnp.mean(ad / (jnp.abs(t32) + _EPS)))
    sums = _reduction_sums(pred, true, max_tile_rows)
    n = jnp.float32(n_total)
    return sums[0] / n, sums[1] / n, sums[2] / n


@functools.partial(jax.jit, static_argnames=("max_tile_rows",))
def _forward(pred, true, mse_w, mae_w, mape_w, *, max_tile_rows=None):
    if pred.shape != true.shape:
        # Mirror the torch module exactly: MSE/MAE are computed with
        # broadcasting on the original shapes; pred is sliced to pred[:, 0]
        # only for the MAPE term (2-D pred / 1-D true case).
        p32 = pred.astype(jnp.float32)
        t32 = true.astype(jnp.float32)
        d = p32 - t32
        mse = jnp.mean(d * d)
        mae = jnp.mean(jnp.abs(d))
        if pred.ndim == 2 and true.ndim == 1:
            p32 = pred[:, 0].astype(jnp.float32)
        mape = jnp.mean(jnp.abs(t32 - p32) / (jnp.abs(t32) + _EPS))
    else:
        mse, mae, mape = _loss_terms(pred, true, max_tile_rows)

    w_mse = mse_w[0] ** 2
    w_mae = mae_w[0] ** 2
    w_mape = mape_w[0] ** 2
    weights_sum = w_mse + w_mae + w_mape + 1e-8
    return (w_mse * mse + w_mae * mae + w_mape * mape) / weights_sum


class AutoWeightedLoss:
    """JAX/Pallas equivalent of the PyTorch AutoWeightedLoss module (forward)."""

    def __init__(self, max_tile_rows=None):
        # nn.Parameter(torch.ones(1)) x 3 — deterministic init.  Forward only;
        # optimizer/autograd state for the weights is outside this kernel.
        self.mse_weight = jnp.ones((1,), jnp.float32)
        self.mae_weight = jnp.ones((1,), jnp.float32)
        self.mape_weight = jnp.ones((1,), jnp.float32)
        self._max_tile_rows = max_tile_rows   # test hook / manual tuning

    def __call__(self, pred, true):
        return _forward(pred, true, self.mse_weight, self.mae_weight,
                        self.mape_weight, max_tile_rows=self._max_tile_rows)


def _reference(pred, true, w_mse=1.0, w_mae=1.0, w_mape=1.0):
    pred = pred.astype(jnp.float32)
    true = true.astype(jnp.float32)
    mse = jnp.mean((pred - true) ** 2)
    mae = jnp.mean(jnp.abs(pred - true))
    mape = jnp.mean(jnp.abs(true - pred) / (jnp.abs(true) + _EPS))
    ws = w_mse ** 2 + w_mae ** 2 + w_mape ** 2 + 1e-8
    return (w_mse ** 2 * mse + w_mae ** 2 * mae + w_mape ** 2 * mape) / ws


if __name__ == "__main__":
    key = jax.random.PRNGKey(0)
    k1, k2, k3, k4 = jax.random.split(key, 4)
    checks = []

    # Case 1: typical iTransformer output (batch, pred_len, n_vars), f32,
    # n = 73728 (multiple of 512) — lane=512, single full-extent block.
    p1 = jax.random.normal(k1, (8, 96, 96), dtype=jnp.float32)
    t1 = jax.random.normal(k2, (8, 96, 96), dtype=jnp.float32)
    l1 = AutoWeightedLoss()(p1, t1)
    jax.block_until_ready(l1)
    checks.append((l1, _reference(p1, t1)))

    # Case 2: small-tile hook -> multi-step accumulation (144 rows, tile 32 ->
    # 5 blocks) with a ragged last block (16 valid rows) masked in-kernel.
    l2 = AutoWeightedLoss(max_tile_rows=32)(p1, t1)
    jax.block_until_ready(l2)
    checks.append((l2, _reference(p1, t1)))

    # Case 3: bf16 inputs (sublane quantum 16), ragged last block (4 valid of
    # 16 rows) via the hook, plus non-unit learned weights.
    p3 = jax.random.normal(k3, (2, 72, 128), dtype=jnp.bfloat16)
    t3 = jax.random.normal(k4, (2, 72, 128), dtype=jnp.bfloat16)
    lf3 = AutoWeightedLoss(max_tile_rows=16)
    lf3.mse_weight = jnp.array([0.5], jnp.float32)
    lf3.mae_weight = jnp.array([2.0], jnp.float32)
    lf3.mape_weight = jnp.array([1.5], jnp.float32)
    l3 = lf3(p3, t3)
    jax.block_until_ready(l3)
    checks.append((l3, _reference(p3, t3, 0.5, 2.0, 1.5)))

    # Case 4: flat size not divisible by 128 -> fused XLA fallback
    # (no pad, no extra HBM copy).
    p4 = jax.random.normal(k1, (4, 90, 13), dtype=jnp.bfloat16)
    t4 = jax.random.normal(k2, (4, 90, 13), dtype=jnp.bfloat16)
    l4 = AutoWeightedLoss()(p4, t4)
    jax.block_until_ready(l4)
    checks.append((l4, _reference(p4, t4)))

    # Case 5: tiny input — small-size fallback path.
    p5 = jax.random.normal(k1, (2, 8, 16), dtype=jnp.float32)
    t5 = jax.random.normal(k2, (2, 8, 16), dtype=jnp.float32)
    l5 = AutoWeightedLoss()(p5, t5)
    jax.block_until_ready(l5)
    checks.append((l5, _reference(p5, t5)))

    for got, want in checks:
        assert jnp.allclose(got, want, rtol=1e-4, atol=1e-6), (got, want)

    print("KERNEL_OK")
</pallas_src>

<mosaic_0001>
module attributes {stable_mosaic.version = 11 : i64} {
  func.func @_loss_sums_kernel(%arg0: i32, %arg1: i32, %arg2: memref<144x512xf32, #tpu.memory_space<vmem>>, %arg3: memref<144x512xf32, #tpu.memory_space<vmem>>, %arg4: memref<1x8x512xf32, #tpu.memory_space<vmem>>) attributes {dimension_semantics = [#tpu.dimension_semantics<parallel>, #tpu.dimension_semantics<arbitrary>], iteration_bounds = array<i64: 1, 1>, scalar_prefetch = 0 : i64, scratch_operands = 0 : i64, tpu.core_type = #tpu.core_type<tc>, window_params = [{transform_indices = @transform_0, window_bounds = array<i64: 144, 512>}, {transform_indices = @transform_1, window_bounds = array<i64: 144, 512>}, {transform_indices = @transform_2, window_bounds = array<i64: 1, 8, 512>}]} {
    %c0_i32 = arith.constant 0 : i32
    %0 = arith.cmpi eq, %arg1, %c0_i32 : i32
    %1 = arith.extui %0 : i1 to i32
    %c0_i32_0 = arith.constant 0 : i32
    %2 = arith.cmpi ne, %1, %c0_i32_0 : i32
    scf.if %2 {
      %cst_16 = arith.constant 0.000000e+00 : f32
      %46 = vector.broadcast %cst_16 : f32 to vector<8x512xf32>
      %c0_17 = arith.constant 0 : index
      %c0_18 = arith.constant 0 : index
      %c0_19 = arith.constant 0 : index
      %47 = vector.load %arg4[%c0_17, %c0_18, %c0_19] : memref<1x8x512xf32, #tpu.memory_space<vmem>>, vector<1x8x512xf32>
      %48 = vector.shape_cast %47 : vector<1x8x512xf32> to vector<8x512xf32>
      %49 = vector.shape_cast %46 : vector<8x512xf32> to vector<1x8x512xf32>
      tpu.vector_store %arg4[%c0_17, %c0_18, %c0_19], %49 {strides = array<i32>} : memref<1x8x512xf32, #tpu.memory_space<vmem>>, vector<1x8x512xf32>,
    } else {
    }
    %c0 = arith.constant 0 : index
    %c0_1 = arith.constant 0 : index
    %3 = vector.load %arg2[%c0, %c0_1] : memref<144x512xf32, #tpu.memory_space<vmem>>, vector<144x512xf32>
    %c0_2 = arith.constant 0 : index
    %c0_3 = arith.constant 0 : index
    %4 = vector.load %arg3[%c0_2, %c0_3] : memref<144x512xf32, #tpu.memory_space<vmem>>, vector<144x512xf32>
    %5 = arith.subf %3, %4 : vector<144x512xf32>
    %6 = math.absf %5 : vector<144x512xf32>
    %7 = math.absf %4 : vector<144x512xf32>
    %cst = arith.constant 9.99999993E-9 : f32
    %8 = vector.broadcast %cst : f32 to vector<144x512xf32>
    %9 = arith.addf %7, %8 : vector<144x512xf32>
    %10 = tpu.reciprocal %9 {approx = true} : vector<144x512xf32> -> vector<144x512xf32>
    %11 = arith.mulf %9, %10 : vector<144x512xf32>
    %cst_4 = arith.constant 2.000000e+00 : f32
    %12 = vector.broadcast %cst_4 : f32 to vector<144x512xf32>
    %13 = arith.subf %12, %11 : vector<144x512xf32>
    %14 = arith.mulf %10, %13 : vector<144x512xf32>
    %15 = arith.mulf %6, %14 : vector<144x512xf32>
    %16 = arith.mulf %5, %5 : vector<144x512xf32>
    %cst_5 = arith.constant dense<0.000000e+00> : vector<512xf32>
    %17 = vector.multi_reduction <add>, %16, %cst_5 [0] : vector<144x512xf32> to vector<512xf32>
    %18 = vector.shape_cast %17 : vector<512xf32> to vector<1x512xf32>
    %cst_6 = arith.constant dense<0.000000e+00> : vector<512xf32>
    %19 = vector.multi_reduction <add>, %6, %cst_6 [0] : vector<144x512xf32> to vector<512xf32>
    %20 = vector.shape_cast %19 : vector<512xf32> to vector<1x512xf32>
    %cst_7 = arith.constant dense<0.000000e+00> : vector<512xf32>
    %21 = vector.multi_reduction <add>, %15, %cst_7 [0] : vector<144x512xf32> to vector<512xf32>
    %22 = vector.shape_cast %21 : vector<512xf32> to vector<1x512xf32>
    %23 = tpu.iota {dimensions = array<i32: 0>} : vector<8x512xi32>
    %c0_i32_8 = arith.constant 0 : i32
    %24 = vector.broadcast %c0_i32_8 : i32 to vector<8x512xi32>
    %25 = arith.cmpi eq, %23, %24 : vector<8x512xi32>
    %c1_i32 = arith.constant 1 : i32
    %26 = vector.broadcast %c1_i32 : i32 to vector<8x512xi32>
    %27 = arith.cmpi eq, %23, %26 : vector<8x512xi32>
    %c2_i32 = arith.constant 2 : i32
    %28 = vector.broadcast %c2_i32 : i32 to vector<8x512xi32>
    %29 = arith.cmpi eq, %23, %28 : vector<8x512xi32>
    %cst_9 = arith.constant 0.000000e+00 : f32
    %30 = vector.shape_cast %22 : vector<1x512xf32> to vector<1x512xf32>
    %31 = vector.broadcast %30 : vector<1x512xf32> to vector<8x512xf32>
    %32 = vector.broadcast %cst_9 : f32 to vector<8x512xf32>
    %33 = arith.select %29, %31, %32 : vector<8x512xi1>, vector<8x512xf32>
    %34 = vector.shape_cast %20 : vector<1x512xf32> to vector<1x512xf32>
    %35 = vector.broadcast %34 : vector<1x512xf32> to vector<8x512xf32>
    %36 = arith.select %27, %35, %33 : vector<8x512xi1>, vector<8x512xf32>
    %37 = vector.shape_cast %18 : vector<1x512xf32> to vector<1x512xf32>
    %38 = vector.broadcast %37 : vector<1x512xf32> to vector<8x512xf32>
    %39 = arith.select %25, %38, %36 : vector<8x512xi1>, vector<8x512xf32>
    %c0_10 = arith.constant 0 : index
    %c0_11 = arith.constant 0 : index
    %c0_12 = arith.constant 0 : index
    %40 = vector.load %arg4[%c0_10, %c0_11, %c0_12] : memref<1x8x512xf32, #tpu.memory_space<vmem>>, vector<1x8x512xf32>
    %41 = vector.shape_cast %40 : vector<1x8x512xf32> to vector<8x512xf32>
    %42 = arith.addf %41, %39 : vector<8x512xf32>
    %c0_13 = arith.constant 0 : index
    %c0_14 = arith.constant 0 : index
    %c0_15 = arith.constant 0 : index
    %43 = vector.load %arg4[%c0_13, %c0_14, %c0_15] : memref<1x8x512xf32, #tpu.memory_space<vmem>>, vector<1x8x512xf32>
    %44 = vector.shape_cast %43 : vector<1x8x512xf32> to vector<8x512xf32>
    %45 = vector.shape_cast %42 : vector<8x512xf32> to vector<1x8x512xf32>
    tpu.vector_store %arg4[%c0_13, %c0_14, %c0_15], %45 {strides = array<i32>} : memref<1x8x512xf32, #tpu.memory_space<vmem>>, vector<1x8x512xf32>,
    return
  }
  func.func @transform_0(%arg0: i32, %arg1: i32) -> (i32, i32) {
    %c1_i32 = arith.constant 1 : i32
    %0 = arith.muli %arg0, %c1_i32 : i32
    %1 = arith.addi %0, %arg1 : i32
    %c0_i32 = arith.constant 0 : i32
    %c0_i32_0 = arith.constant 0 : i32
    return %1, %c0_i32 : i32, i32
  }
  func.func @transform_1(%arg0: i32, %arg1: i32) -> (i32, i32) {
    %c1_i32 = arith.constant 1 : i32
    %0 = arith.muli %arg0, %c1_i32 : i32
    %1 = arith.addi %0, %arg1 : i32
    %c0_i32 = arith.constant 0 : i32
    %c0_i32_0 = arith.constant 0 : i32
    return %1, %c0_i32 : i32, i32
  }
  func.func @transform_2(%arg0: i32, %arg1: i32) -> (i32, i32, i32) {
    %c0_i32 = arith.constant 0 : i32
    %c0_i32_0 = arith.constant 0 : i32
    %c0_i32_1 = arith.constant 0 : i32
    return %arg0, %c0_i32, %c0_i32_0 : i32, i32, i32
  }
}

</mosaic_0001>

<llo_original>
// kernel: _forward.1
$region0: #{_forward.1}
  #allocation0 [shape = 'u32[]', space=smem, size = 0x4, offset = 0x4, fixed_abs, tag = 'smem constant byte address 0x4 - core index']
  #allocation1 [shape = 'u32[144,128]{1,0:T(1,128)}', space=vmem, size = 0x12000, scoped, tag = 'internal scratch']
  %s0 = inlined_call_operand.vmem [shape: f32[144,512], index: 0, kind: input, shape index: {}]
  %s1 = inlined_call_operand.vmem [shape: f32[144,512], index: 1, kind: input, shape index: {}]
  %s2 = inlined_call_operand.vmem [shape: f32[1,8,512], index: 2, kind: output, shape index: {}]
  %s3 = sld [smem:[#allocation0]]
  $region22: #{_forward.1} parent=0
    _
  %s5 = ssub.s32 1, %s3
  %s6 = scalar_select 0, %s5, %s3
  // Predicated region
  $region2: #{_forward.1} parent=0 // pred_check
    _
  $region3: #{_forward.1} parent=0 // pred_check_branch
    %8 = sbr.rel (0) target = $region5
  $region4: #{_forward.1} parent=0 // pred_region
    %s9 = sadd.s32 0, 0
    %s10 = smul.u32 18, %s9
    %p11 = scmp.lt.s32.totalorder %s10, 17
    %s12 = scalar_select %p11, %s10, 17
    %s13 = smul.addr %s12, 4
    %s14 = smul.addr %s13, 8
    %s15 = scalar_lea.vmem %s0, %s14
    %s16 = sadd.s32 0, 0
    %s17 = smul.u32 18, %s16
  $region5: #{_forward.1} parent=0 // pred_fallthru
    _
  // Predicated region
  $region6: #{_forward.1} parent=0 // pred_check
    _
  $region7: #{_forward.1} parent=0 // pred_check_branch
    %19 = sbr.rel (0) target = $region9
  $region8: #{_forward.1} parent=0 // pred_region
    %s20 = sadd.s32 0, 0
    %s21 = smul.u32 18, %s20
    %p22 = scmp.lt.s32.totalorder %s21, 17
    %s23 = scalar_select %p22, %s21, 17
    %s24 = smul.addr %s23, 4
    %s25 = smul.addr %s24, 8
    %s26 = scalar_lea.vmem %s1, %s25
    %s27 = sadd.s32 0, 0
    %s28 = smul.u32 18, %s27
  $region9: #{_forward.1} parent=0 // pred_fallthru
    _
  %s29 = sadd.s32 0, 0
  %s30 = smul.u32 18, %s29
  %p31 = scmp.lt.s32.totalorder %s30, 17
  %s32 = scalar_select %p31, %s30, 17
  %s33 = smul.addr %s32, 4
  %s34 = smul.addr %s33, 8
  %s35 = scalar_lea.vmem %s0, %s34
  %s36 = sadd.s32 0, 0
  %s37 = smul.u32 18, %s36
  %p38 = scmp.lt.s32.totalorder %s37, 17
  %s39 = scalar_select %p38, %s37, 17
  %s40 = smul.addr %s39, 4
  %s41 = smul.addr %s40, 8
  %s42 = scalar_lea.vmem %s1, %s41
  %s43 = sadd.s32 0, 0
  %s44 = smul.u32 18, %s43
  %p45 = scmp.lt.s32.totalorder %s44, 17
  %s46 = scalar_select %p45, %s44, 17
  %s47 = smul.addr %s46, 4
  %s48 = smul.addr %s47, 8
  %s49 = scalar_lea.vmem %s0, %s48
  %s50 = sadd.s32 0, 0
  %s51 = smul.u32 18, %s50
  %s52 = sadd.s32 0, 0
  %s53 = smul.u32 18, %s52
  %p54 = scmp.lt.s32.totalorder %s53, 17
  %s55 = scalar_select %p54, %s53, 17
  %s56 = smul.addr %s55, 4
  %s57 = smul.addr %s56, 8
  %s58 = scalar_lea.vmem %s1, %s57
  %s59 = sadd.s32 0, 0
  %s60 = smul.u32 18, %s59
  %p61 = scmp.eq.s32.totalorder 0, 0
  // Predicated region
  $region10: #{_forward.1} parent=0 // pred_check
    %p62 = pneg %p61
  $region11: #{_forward.1} parent=0 // pred_check_branch
    %64 = sbr.rel (%p62) target = $region13
  $region12: #{_forward.1} parent=0 // pred_region
    %65 = vst [vmem:[%s2] sm:$0xff] 0.0
    %66 = vst [vmem:[%s2 + $0x8] sm:$0xff] 0.0
    %67 = vst [vmem:[%s2 + $0x10] sm:$0xff] 0.0
    %68 = vst [vmem:[%s2 + $0x18] sm:$0xff] 0.0
  $region13: #{_forward.1} parent=0 // pred_fallthru
    _
  %v69 = vld [vmem:[%s49] sm:$0xff]
  %v70 = vld [vmem:[%s49 + $0x8] sm:$0xff]
  %v71 = vld [vmem:[%s49 + $0x10] sm:$0xff]
  %v72 = vld [vmem:[%s49 + $0x18] sm:$0xff]
  %v73 = vld [vmem:[%s49 + $0x20] sm:$0xff]
  %v74 = vld [vmem:[%s49 + $0x28] sm:$0xff]
  %v75 = vld [vmem:[%s49 + $0x30] sm:$0xff]
  %v76 = vld [vmem:[%s49 + $0x38] sm:$0xff]
  %v77 = vld [vmem:[%s49 + $0x40] sm:$0xff]
  %v78 = vld [vmem:[%s49 + $0x48] sm:$0xff]
  %v79 = vld [vmem:[%s49 + $0x50] sm:$0xff]
  %v80 = vld [vmem:[%s49 + $0x58] sm:$0xff]
  %v81 = vld [vmem:[%s49 + $0x60] sm:$0xff]
  %v82 = vld [vmem:[%s49 + $0x68] sm:$0xff]
  %v83 = vld [vmem:[%s49 + $0x70] sm:$0xff]
  %v84 = vld [vmem:[%s49 + $0x78] sm:$0xff]
  %v85 = vld [vmem:[%s49 + $0x80] sm:$0xff]
  %v86 = vld [vmem:[%s49 + $0x88] sm:$0xff]
  %v87 = vld [vmem:[%s49 + $0x90] sm:$0xff]
  %v88 = vld [vmem:[%s49 + $0x98] sm:$0xff]
  %v89 = vld [vmem:[%s49 + $0xa0] sm:$0xff]
  %v90 = vld [vmem:[%s49 + $0xa8] sm:$0xff]
  %v91 = vld [vmem:[%s49 + $0xb0] sm:$0xff]
  %v92 = vld [vmem:[%s49 + $0xb8] sm:$0xff]
  %v93 = vld [vmem:[%s49 + $0xc0] sm:$0xff]
  %v94 = vld [vmem:[%s49 + $0xc8] sm:$0xff]
  %v95 = vld [vmem:[%s49 + $0xd0] sm:$0xff]
  %v96 = vld [vmem:[%s49 + $0xd8] sm:$0xff]
  %v97 = vld [vmem:[%s49 + $0xe0] sm:$0xff]
  %v98 = vld [vmem:[%s49 + $0xe8] sm:$0xff]
  %v99 = vld [vmem:[%s49 + $0xf0] sm:$0xff]
  %v100 = vld [vmem:[%s49 + $0xf8] sm:$0xff]
  %v101 = vld [vmem:[%s49 + $0x100] sm:$0xff]
  %v102 = vld [vmem:[%s49 + $0x108] sm:$0xff]
  %v103 = vld [vmem:[%s49 + $0x110] sm:$0xff]
  %v104 = vld [vmem:[%s49 + $0x118] sm:$0xff]
  %v105 = vld [vmem:[%s49 + $0x120] sm:$0xff]
  %v106 = vld [vmem:[%s49 + $0x128] sm:$0xff]
  %v107 = vld [vmem:[%s49 + $0x130] sm:$0xff]
  %v108 = vld [vmem:[%s49 + $0x138] sm:$0xff]
  %v109 = vld [vmem:[%s49 + $0x140] sm:$0xff]
  %v110 = vld [vmem:[%s49 + $0x148] sm:$0xff]
  %v111 = vld [vmem:[%s49 + $0x150] sm:$0xff]
  %v112 = vld [vmem:[%s49 + $0x158] sm:$0xff]
  %v113 = vld [vmem:[%s49 + $0x160] sm:$0xff]
  %v114 = vld [vmem:[%s49 + $0x168] sm:$0xff]
  %v115 = vld [vmem:[%s49 + $0x170] sm:$0xff]
  %v116 = vld [vmem:[%s49 + $0x178] sm:$0xff]
  %v117 = vld [vmem:[%s49 + $0x180] sm:$0xff]
  %v118 = vld [vmem:[%s49 + $0x188] sm:$0xff]
  %v119 = vld [vmem:[%s49 + $0x190] sm:$0xff]
  %v120 = vld [vmem:[%s49 + $0x198] sm:$0xff]
  %v121 = vld [vmem:[%s49 + $0x1a0] sm:$0xff]
  %v122 = vld [vmem:[%s49 + $0x1a8] sm:$0xff]
  %v123 = vld [vmem:[%s49 + $0x1b0] sm:$0xff]
  %v124 = vld [vmem:[%s49 + $0x1b8] sm:$0xff]
  %v125 = vld [vmem:[%s49 + $0x1c0] sm:$0xff]
  %v126 = vld [vmem:[%s49 + $0x1c8] sm:$0xff]
  %v127 = vld [vmem:[%s49 + $0x1d0] sm:$0xff]
  %v128 = vld [vmem:[%s49 + $0x1d8] sm:$0xff]
  %v129 = vld [vmem:[%s49 + $0x1e0] sm:$0xff]
  %v130 = vld [vmem:[%s49 + $0x1e8] sm:$0xff]
  %v131 = vld [vmem:[%s49 + $0x1f0] sm:$0xff]
  %v132 = vld [vmem:[%s49 + $0x1f8] sm:$0xff]
  %v133 = vld [vmem:[%s49 + $0x200] sm:$0xff]
  %v134 = vld [vmem:[%s49 + $0x208] sm:$0xff]
  %v135 = vld [vmem:[%s49 + $0x210] sm:$0xff]
  %v136 = vld [vmem:[%s49 + $0x218] sm:$0xff]
  %v137 = vld [vmem:[%s49 + $0x220] sm:$0xff]
  %v138 = vld [vmem:[%s49 + $0x228] sm:$0xff]
  %v139 = vld [vmem:[%s49 + $0x230] sm:$0xff]
  %v140 = vld [vmem:[%s49 + $0x238] sm:$0xff]
  %v141 = vld [vmem:[%s58] sm:$0xff]
  %v142 = vld [vmem:[%s58 + $0x8] sm:$0xff]
  %v143 = vld [vmem:[%s58 + $0x10] sm:$0xff]
  %v144 = vld [vmem:[%s58 + $0x18] sm:$0xff]
  %v145 = vld [vmem:[%s58 + $0x20] sm:$0xff]
  %v146 = vld [vmem:[%s58 + $0x28] sm:$0xff]
  %v147 = vld [vmem:[%s58 + $0x30] sm:$0xff]
  %v148 = vld [vmem:[%s58 + $0x38] sm:$0xff]
  %v149 = vld [vmem:[%s58 + $0x40] sm:$0xff]
  %v150 = vld [vmem:[%s58 + $0x48] sm:$0xff]
  %v151 = vld [vmem:[%s58 + $0x50] sm:$0xff]
  %v152 = vld [vmem:[%s58 + $0x58] sm:$0xff]
  %v153 = vld [vmem:[%s58 + $0x60] sm:$0xff]
  %v154 = vld [vmem:[%s58 + $0x68] sm:$0xff]
  %v155 = vld [vmem:[%s58 + $0x70] sm:$0xff]
  %v156 = vld [vmem:[%s58 + $0x78] sm:$0xff]
  %v157 = vld [vmem:[%s58 + $0x80] sm:$0xff]
  %v158 = vld [vmem:[%s58 + $0x88] sm:$0xff]
  %v159 = vld [vmem:[%s58 + $0x90] sm:$0xff]
  %v160 = vld [vmem:[%s58 + $0x98] sm:$0xff]
  %v161 = vld [vmem:[%s58 + $0xa0] sm:$0xff]
  %v162 = vld [vmem:[%s58 + $0xa8] sm:$0xff]
  %v163 = vld [vmem:[%s58 + $0xb0] sm:$0xff]
  %v164 = vld [vmem:[%s58 + $0xb8] sm:$0xff]
  %v165 = vld [vmem:[%s58 + $0xc0] sm:$0xff]
  %v166 = vld [vmem:[%s58 + $0xc8] sm:$0xff]
  %v167 = vld [vmem:[%s58 + $0xd0] sm:$0xff]
  %v168 = vld [vmem:[%s58 + $0xd8] sm:$0xff]
  %v169 = vld [vmem:[%s58 + $0xe0] sm:$0xff]
  %v170 = vld [vmem:[%s58 + $0xe8] sm:$0xff]
  %v171 = vld [vmem:[%s58 + $0xf0] sm:$0xff]
  %v172 = vld [vmem:[%s58 + $0xf8] sm:$0xff]
  %v173 = vld [vmem:[%s58 + $0x100] sm:$0xff]
  %v174 = vld [vmem:[%s58 + $0x108] sm:$0xff]
  %v175 = vld [vmem:[%s58 + $0x110] sm:$0xff]
  %v176 = vld [vmem:[%s58 + $0x118] sm:$0xff]
  %v177 = vld [vmem:[%s58 + $0x120] sm:$0xff]
  %v178 = vld [vmem:[%s58 + $0x128] sm:$0xff]
  %v179 = vld [vmem:[%s58 + $0x130] sm:$0xff]
  %v180 = vld [vmem:[%s58 + $0x138] sm:$0xff]
  %v181 = vld [vmem:[%s58 + $0x140] sm:$0xff]
  %v182 = vld [vmem:[%s58 + $0x148] sm:$0xff]
  %v183 = vld [vmem:[%s58 + $0x150] sm:$0xff]
  %v184 = vld [vmem:[%s58 + $0x158] sm:$0xff]
  %v185 = vld [vmem:[%s58 + $0x160] sm:$0xff]
  %v186 = vld [vmem:[%s58 + $0x168] sm:$0xff]
  %v187 = vld [vmem:[%s58 + $0x170] sm:$0xff]
  %v188 = vld [vmem:[%s58 + $0x178] sm:$0xff]
  %v189 = vld [vmem:[%s58 + $0x180] sm:$0xff]
  %v190 = vld [vmem:[%s58 + $0x188] sm:$0xff]
  %v191 = vld [vmem:[%s58 + $0x190] sm:$0xff]
  %v192 = vld [vmem:[%s58 + $0x198] sm:$0xff]
  %v193 = vld [vmem:[%s58 + $0x1a0] sm:$0xff]
  %v194 = vld [vmem:[%s58 + $0x1a8] sm:$0xff]
  %v195 = vld [vmem:[%s58 + $0x1b0] sm:$0xff]
  %v196 = vld [vmem:[%s58 + $0x1b8] sm:$0xff]
  %v197 = vld [vmem:[%s58 + $0x1c0] sm:$0xff]
  %v198 = vld [vmem:[%s58 + $0x1c8] sm:$0xff]
  %v199 = vld [vmem:[%s58 + $0x1d0] sm:$0xff]
  %v200 = vld [vmem:[%s58 + $0x1d8] sm:$0xff]
  %v201 = vld [vmem:[%s58 + $0x1e0] sm:$0xff]
  %v202 = vld [vmem:[%s58 + $0x1e8] sm:$0xff]
  %v203 = vld [vmem:[%s58 + $0x1f0] sm:$0xff]
  %v204 = vld [vmem:[%s58 + $0x1f8] sm:$0xff]
  %v205 = vld [vmem:[%s58 + $0x200] sm:$0xff]
  %v206 = vld [vmem:[%s58 + $0x208] sm:$0xff]
  %v207 = vld [vmem:[%s58 + $0x210] sm:$0xff]
  %v208 = vld [vmem:[%s58 + $0x218] sm:$0xff]
  %v209 = vld [vmem:[%s58 + $0x220] sm:$0xff]
  %v210 = vld [vmem:[%s58 + $0x228] sm:$0xff]
  %v211 = vld [vmem:[%s58 + $0x230] sm:$0xff]
  %v212 = vld [vmem:[%s58 + $0x238] sm:$0xff]
  %v213 = vsub.f32 %v69, %v141
  %v214 = vsub.f32 %v70, %v142
  %v215 = vsub.f32 %v71, %v143
  %v216 = vsub.f32 %v72, %v144
  %v217 = vsub.f32 %v73, %v145
  %v218 = vsub.f32 %v74, %v146
  %v219 = vsub.f32 %v75, %v147
  %v220 = vsub.f32 %v76, %v148
  %v221 = vsub.f32 %v77, %v149
  %v222 = vsub.f32 %v78, %v150
  %v223 = vsub.f32 %v79, %v151
  %v224 = vsub.f32 %v80, %v152
  %v225 = vsub.f32 %v81, %v153
  %v226 = vsub.f32 %v82, %v154
  %v227 = vsub.f32 %v83, %v155
  %v228 = vsub.f32 %v84, %v156
  %v229 = vsub.f32 %v85, %v157
  %v230 = vsub.f32 %v86, %v158
  %v231 = vsub.f32 %v87, %v159
  %v232 = vsub.f32 %v88, %v160
  %v233 = vsub.f32 %v89, %v161
  %v234 = vsub.f32 %v90, %v162
  %v235 = vsub.f32 %v91, %v163
  %v236 = vsub.f32 %v92, %v164
  %v237 = vsub.f32 %v93, %v165
  %v238 = vsub.f32 %v94, %v166
  %v239 = vsub.f32 %v95, %v167
  %v240 = vsub.f32 %v96, %v168
  %v241 = vsub.f32 %v97, %v169
  %v242 = vsub.f32 %v98, %v170
  %v243 = vsub.f32 %v99, %v171
  %v244 = vsub.f32 %v100, %v172
  %v245 = vsub.f32 %v101, %v173
  %v246 = vsub.f32 %v102, %v174
  %v247 = vsub.f32 %v103, %v175
  %v248 = vsub.f32 %v104, %v176
  %v249 = vsub.f32 %v105, %v177
  %v250 = vsub.f32 %v106, %v178
  %v251 = vsub.f32 %v107, %v179
  %v252 = vsub.f32 %v108, %v180
  %v253 = vsub.f32 %v109, %v181
  %v254 = vsub.f32 %v110, %v182
  %v255 = vsub.f32 %v111, %v183
  %v256 = vsub.f32 %v112, %v184
  %v257 = vsub.f32 %v113, %v185
  %v258 = vsub.f32 %v114, %v186
  %v259 = vsub.f32 %v115, %v187
  %v260 = vsub.f32 %v116, %v188
  %v261 = vsub.f32 %v117, %v189
  %v262 = vsub.f32 %v118, %v190
  %v263 = vsub.f32 %v119, %v191
  %v264 = vsub.f32 %v120, %v192
  %v265 = vsub.f32 %v121, %v193
  %v266 = vsub.f32 %v122, %v194
  %v267 = vsub.f32 %v123, %v195
  %v268 = vsub.f32 %v124, %v196
  %v269 = vsub.f32 %v125, %v197
  %v270 = vsub.f32 %v126, %v198
  %v271 = vsub.f32 %v127, %v199
  %v272 = vsub.f32 %v128, %v200
  %v273 = vsub.f32 %v129, %v201
  %v274 = vsub.f32 %v130, %v202
  %v275 = vsub.f32 %v131, %v203
  %v276 = vsub.f32 %v132, %v204
  %v277 = vsub.f32 %v133, %v205
  %v278 = vsub.f32 %v134, %v206
  %v279 = vsub.f32 %v135, %v207
  %v280 = vsub.f32 %v136, %v208
  %v281 = vsub.f32 %v137, %v209
  %v282 = vsub.f32 %v138, %v210
  %v283 = vsub.f32 %v139, %v211
  %v284 = vsub.f32 %v140, %v212
  %v285 = vand.u32 2147483647, %v213
  %v286 = vand.u32 2147483647, %v214
  %v287 = vand.u32 2147483647, %v215
  %v288 = vand.u32 2147483647, %v216
  %v289 = vand.u32 2147483647, %v217
  %v290 = vand.u32 2147483647, %v218
  %v291 = vand.u32 2147483647, %v219
  %v292 = vand.u32 2147483647, %v220
  %v293 = vand.u32 2147483647, %v221
  %v294 = vand.u32 2147483647, %v222
  %v295 = vand.u32 2147483647, %v223
  %v296 = vand.u32 2147483647, %v224
  %v297 = vand.u32 2147483647, %v225
  %v298 = vand.u32 2147483647, %v226
  %v299 = vand.u32 2147483647, %v227
  %v300 = vand.u32 2147483647, %v228
  %v301 = vand.u32 2147483647, %v229
  %v302 = vand.u32 2147483647, %v230
  %v303 = vand.u32 2147483647, %v231
  %v304 = vand.u32 2147483647, %v232
  %v305 = vand.u32 2147483647, %v233
  %v306 = vand.u32 2147483647, %v234
  %v307 = vand.u32 2147483647, %v235
  %v308 = vand.u32 2147483647, %v236
  %v309 = vand.u32 2147483647, %v237
  %v310 = vand.u32 2147483647, %v238
  %v311 = vand.u32 2147483647, %v239
  %v312 = vand.u32 2147483647, %v240
  %v313 = vand.u32 2147483647, %v241
  %v314 = vand.u32 2147483647, %v242
  %v315 = vand.u32 2147483647, %v243
  %v316 = vand.u32 2147483647, %v244
  %v317 = vand.u32 2147483647, %v245
  %v318 = vand.u32 2147483647, %v246
  %v319 = vand.u32 2147483647, %v247
  %v320 = vand.u32 2147483647, %v248
  %v321 = vand.u32 2147483647, %v249
  %v322 = vand.u32 2147483647, %v250
  %v323 = vand.u32 2147483647, %v251
  %v324 = vand.u32 2147483647, %v252
  %v325 = vand.u32 2147483647, %v253
  %v326 = vand.u32 2147483647, %v254
  %v327 = vand.u32 2147483647, %v255
  %v328 = vand.u32 2147483647, %v256
  %v329 = vand.u32 2147483647, %v257
  %v330 = vand.u32 2147483647, %v258
  %v331 = vand.u32 2147483647, %v259
  %v332 = vand.u32 2147483647, %v260
  %v333 = vand.u32 2147483647, %v261
  %v334 = vand.u32 2147483647, %v262
  %v335 = vand.u32 2147483647, %v263
  %v336 = vand.u32 2147483647, %v264
  %v337 = vand.u32 2147483647, %v265
  %v338 = vand.u32 2147483647, %v266
  %v339 = vand.u32 2147483647, %v267
  %v340 = vand.u32 2147483647, %v268
  %v341 = vand.u32 2147483647, %v269
  %v342 = vand.u32 2147483647, %v270
  %v343 = vand.u32 2147483647, %v271
  %v344 = vand.u32 2147483647, %v272
  %v345 = vand.u32 2147483647, %v273
  %v346 = vand.u32 2147483647, %v274
  %v347 = vand.u32 2147483647, %v275
  %v348 = vand.u32 2147483647, %v276
  %v349 = vand.u32 2147483647, %v277
  %v350 = vand.u32 2147483647, %v278
  %v351 = vand.u32 2147483647, %v279
  %v352 = vand.u32 2147483647, %v280
  %v353 = vand.u32 2147483647, %v281
  %v354 = vand.u32 2147483647, %v282
  %v355 = vand.u32 2147483647, %v283
  %v356 = vand.u32 2147483647, %v284
  %v357 = vand.u32 2147483647, %v141
  %v358 = vand.u32 2147483647, %v142
  %v359 = vand.u32 2147483647, %v143
  %v360 = vand.u32 2147483647, %v144
  %v361 = vand.u32 2147483647, %v145
  %v362 = vand.u32 2147483647, %v146
  %v363 = vand.u32 2147483647, %v147
  %v364 = vand.u32 2147483647, %v148
  %v365 = vand.u32 2147483647, %v149
  %v366 = vand.u32 2147483647, %v150
  %v367 = vand.u32 2147483647, %v151
  %v368 = vand.u32 2147483647, %v152
  %v369 = vand.u32 2147483647, %v153
  %v370 = vand.u32 2147483647, %v154
  %v371 = vand.u32 2147483647, %v155
  %v372 = vand.u32 2147483647, %v156
  %v373 = vand.u32 2147483647, %v157
  %v374 = vand.u32 2147483647, %v158
  %v375 = vand.u32 2147483647, %v159
  %v376 = vand.u32 2147483647, %v160
  %v377 = vand.u32 2147483647, %v161
  %v378 = vand.u32 2147483647, %v162
  %v379 = vand.u32 2147483647, %v163
  %v380 = vand.u32 2147483647, %v164
  %v381 = vand.u32 2147483647, %v165
  %v382 = vand.u32 2147483647, %v166
  %v383 = vand.u32 2147483647, %v167
  %v384 = vand.u32 2147483647, %v168
  %v385 = vand.u32 2147483647, %v169
  %v386 = vand.u32 2147483647, %v170
  %v387 = vand.u32 2147483647, %v171
  %v388 = vand.u32 2147483647, %v172
  %v389 = vand.u32 2147483647, %v173
  %v390 = vand.u32 2147483647, %v174
  %v391 = vand.u32 2147483647, %v175
  %v392 = vand.u32 2147483647, %v176
  %v393 = vand.u32 2147483647, %v177
  %v394 = vand.u32 2147483647, %v178
  %v395 = vand.u32 2147483647, %v179
  %v396 = vand.u32 2147483647, %v180
  %v397 = vand.u32 2147483647, %v181
  %v398 = vand.u32 2147483647, %v182
  %v399 = vand.u32 2147483647, %v183
  %v400 = vand.u32 2147483647, %v184
  %v401 = vand.u32 2147483647, %v185
  %v402 = vand.u32 2147483647, %v186
  %v403 = vand.u32 2147483647, %v187
  %v404 = vand.u32 2147483647, %v188
  %v405 = vand.u32 2147483647, %v189
  %v406 = vand.u32 2147483647, %v190
  %v407 = vand.u32 2147483647, %v191
  %v408 = vand.u32 2147483647, %v192
  %v409 = vand.u32 2147483647, %v193
  %v410 = vand.u32 2147483647, %v194
  %v411 = vand.u32 2147483647, %v195
  %v412 = vand.u32 2147483647, %v196
  %v413 = vand.u32 2147483647, %v197
  %v414 = vand.u32 2147483647, %v198
  %v415 = vand.u32 2147483647, %v199
  %v416 = vand.u32 2147483647, %v200
  %v417 = vand.u32 2147483647, %v201
  %v418 = vand.u32 2147483647, %v202
  %v419 = vand.u32 2147483647, %v203
  %v420 = vand.u32 2147483647, %v204
  %v421 = vand.u32 2147483647, %v205
  %v422 = vand.u32 2147483647, %v206
  %v423 = vand.u32 2147483647, %v207
  %v424 = vand.u32 2147483647, %v208
  %v425 = vand.u32 2147483647, %v209
  %v426 = vand.u32 2147483647, %v210
  %v427 = vand.u32 2147483647, %v211
  %v428 = vand.u32 2147483647, %v212
  %v429 = vadd.f32 %v357, 1e-08
  %v430 = vadd.f32 %v358, 1e-08
  %v431 = vadd.f32 %v359, 1e-08
  %v432 = vadd.f32 %v360, 1e-08
  %v433 = vadd.f32 %v361, 1e-08
  %v434 = vadd.f32 %v362, 1e-08
  %v435 = vadd.f32 %v363, 1e-08
  %v436 = vadd.f32 %v364, 1e-08
  %v437 = vadd.f32 %v365, 1e-08
  %v438 = vadd.f32 %v366, 1e-08
  %v439 = vadd.f32 %v367, 1e-08
  %v440 = vadd.f32 %v368, 1e-08
  %v441 = vadd.f32 %v369, 1e-08
  %v442 = vadd.f32 %v370, 1e-08
  %v443 = vadd.f32 %v371, 1e-08
  %v444 = vadd.f32 %v372, 1e-08
  %v445 = vadd.f32 %v373, 1e-08
  %v446 = vadd.f32 %v374, 1e-08
  %v447 = vadd.f32 %v375, 1e-08
  %v448 = vadd.f32 %v376, 1e-08
  %v449 = vadd.f32 %v377, 1e-08
  %v450 = vadd.f32 %v378, 1e-08
  %v451 = vadd.f32 %v379, 1e-08
  %v452 = vadd.f32 %v380, 1e-08
  %v453 = vadd.f32 %v381, 1e-08
  %v454 = vadd.f32 %v382, 1e-08
  %v455 = vadd.f32 %v383, 1e-08
  %v456 = vadd.f32 %v384, 1e-08
  %v457 = vadd.f32 %v385, 1e-08
  %v458 = vadd.f32 %v386, 1e-08
  %v459 = vadd.f32 %v387, 1e-08
  %v460 = vadd.f32 %v388, 1e-08
  %v461 = vadd.f32 %v389, 1e-08
  %v462 = vadd.f32 %v390, 1e-08
  %v463 = vadd.f32 %v391, 1e-08
  %v464 = vadd.f32 %v392, 1e-08
  %v465 = vadd.f32 %v393, 1e-08
  %v466 = vadd.f32 %v394, 1e-08
  %v467 = vadd.f32 %v395, 1e-08
  %v468 = vadd.f32 %v396, 1e-08
  %v469 = vadd.f32 %v397, 1e-08
  %v470 = vadd.f32 %v398, 1e-08
  %v471 = vadd.f32 %v399, 1e-08
  %v472 = vadd.f32 %v400, 1e-08
  %v473 = vadd.f32 %v401, 1e-08
  %v474 = vadd.f32 %v402, 1e-08
  %v475 = vadd.f32 %v403, 1e-08
  %v476 = vadd.f32 %v404, 1e-08
  %v477 = vadd.f32 %v405, 1e-08
  %v478 = vadd.f32 %v406, 1e-08
  %v479 = vadd.f32 %v407, 1e-08
  %v480 = vadd.f32 %v408, 1e-08
  %v481 = vadd.f32 %v409, 1e-08
  %v482 = vadd.f32 %v410, 1e-08
  %v483 = vadd.f32 %v411, 1e-08
  %v484 = vadd.f32 %v412, 1e-08
  %v485 = vadd.f32 %v413, 1e-08
  %v486 = vadd.f32 %v414, 1e-08
  %v487 = vadd.f32 %v415, 1e-08
  %v488 = vadd.f32 %v416, 1e-08
  %v489 = vadd.f32 %v417, 1e-08
  %v490 = vadd.f32 %v418, 1e-08
  %v491 = vadd.f32 %v419, 1e-08
  %v492 = vadd.f32 %v420, 1e-08
  %v493 = vadd.f32 %v421, 1e-08
  %v494 = vadd.f32 %v422, 1e-08
  %v495 = vadd.f32 %v423, 1e-08
  %v496 = vadd.f32 %v424, 1e-08
  %v497 = vadd.f32 %v425, 1e-08
  %v498 = vadd.f32 %v426, 1e-08
  %v499 = vadd.f32 %v427, 1e-08
  %v500 = vadd.f32 %v428, 1e-08
  %v501 = vrcp.pop %v429
  %v502 = vrcp.pop %v430
  %v503 = vrcp.pop %v431
  %v504 = vrcp.pop %v432
  %v505 = vrcp.pop %v433
  %v506 = vrcp.pop %v434
  %v507 = vrcp.pop %v435
  %v508 = vrcp.pop %v436
  %v509 = vrcp.pop %v437
  %v510 = vrcp.pop %v438
  %v511 = vrcp.pop %v439
  %v512 = vrcp.pop %v440
  %v513 = vrcp.pop %v441
  %v514 = vrcp.pop %v442
  %v515 = vrcp.pop %v443
  %v516 = vrcp.pop %v444
  %v517 = vrcp.pop %v445
  %v518 = vrcp.pop %v446
  %v519 = vrcp.pop %v447
  %v520 = vrcp.pop %v448
  %v521 = vrcp.pop %v449
  %v522 = vrcp.pop %v450
  %v523 = vrcp.pop %v451
  %v524 = vrcp.pop %v452
  %v525 = vrcp.pop %v453
  %v526 = vrcp.pop %v454
  %v527 = vrcp.pop %v455
  %v528 = vrcp.pop %v456
  %v529 = vrcp.pop %v457
  %v530 = vrcp.pop %v458
  %v531 = vrcp.pop %v459
  %v532 = vrcp.pop %v460
  %v533 = vrcp.pop %v461
  %v534 = vrcp.pop %v462
  %v535 = vrcp.pop %v463
  %v536 = vrcp.pop %v464
  %v537 = vrcp.pop %v465
  %v538 = vrcp.pop %v466
  %v539 = vrcp.pop %v467
  %v540 = vrcp.pop %v468
  %v541 = vrcp.pop %v469
  %v542 = vrcp.pop %v470
  %v543 = vrcp.pop %v471
  %v544 = vrcp.pop %v472
  %v545 = vrcp.pop %v473
  %v546 = vrcp.pop %v474
  %v547 = vrcp.pop %v475
  %v548 = vrcp.pop %v476
  %v549 = vrcp.pop %v477
  %v550 = vrcp.pop %v478
  %v551 = vrcp.pop %v479
  %v552 = vrcp.pop %v480
  %v553 = vrcp.pop %v481
  %v554 = vrcp.pop %v482
  %v555 = vrcp.pop %v483
  %v556 = vrcp.pop %v484
  %v557 = vrcp.pop %v485
  %v558 = vrcp.pop %v486
  %v559 = vrcp.pop %v487
  %v560 = vrcp.pop %v488
  %v561 = vrcp.pop %v489
  %v562 = vrcp.pop %v490
  %v563 = vrcp.pop %v491
  %v564 = vrcp.pop %v492
  %v565 = vrcp.pop %v493
  %v566 = vrcp.pop %v494
  %v567 = vrcp.pop %v495
  %v568 = vrcp.pop %v496
  %v569 = vrcp.pop %v497
  %v570 = vrcp.pop %v498
  %v571 = vrcp.pop %v499
  %v572 = vrcp.pop %v500
  %v573 = vmul.f32 %v429, %v501
  %v574 = vmul.f32 %v430, %v502
  %v575 = vmul.f32 %v431, %v503
  %v576 = vmul.f32 %v432, %v504
  %v577 = vmul.f32 %v433, %v505
  %v578 = vmul.f32 %v434, %v506
  %v579 = vmul.f32 %v435, %v507
  %v580 = vmul.f32 %v436, %v508
  %v581 = vmul.f32 %v437, %v509
  %v582 = vmul.f32 %v438, %v510
  %v583 = vmul.f32 %v439, %v511
  %v584 = vmul.f32 %v440, %v512
  %v585 = vmul.f32 %v441, %v513
  %v586 = vmul.f32 %v442, %v514
  %v587 = vmul.f32 %v443, %v515
  %v588 = vmul.f32 %v444, %v516
  %v589 = vmul.f32 %v445, %v517
  %v590 = vmul.f32 %v446, %v518
  %v591 = vmul.f32 %v447, %v519
  %v592 = vmul.f32 %v448, %v520
  %v593 = vmul.f32 %v449, %v521
  %v594 = vmul.f32 %v450, %v522
  %v595 = vmul.f32 %v451, %v523
  %v596 = vmul.f32 %v452, %v524
  %v597 = vmul.f32 %v453, %v525
  %v598 = vmul.f32 %v454, %v526
  %v599 = vmul.f32 %v455, %v527
  %v600 = vmul.f32 %v456, %v528
  %v601 = vmul.f32 %v457, %v529
  %v602 = vmul.f32 %v458, %v530
  %v603 = vmul.f32 %v459, %v531
  %v604 = vmul.f32 %v460, %v532
  %v605 = vmul.f32 %v461, %v533
  %v606 = vmul.f32 %v462, %v534
  %v607 = vmul.f32 %v463, %v535
  %v608 = vmul.f32 %v464, %v536
  %v609 = vmul.f32 %v465, %v537
  %v610 = vmul.f32 %v466, %v538
  %v611 = vmul.f32 %v467, %v539
  %v612 = vmul.f32 %v468, %v540
  %v613 = vmul.f32 %v469, %v541
  %v614 = vmul.f32 %v470, %v542
  %v615 = vmul.f32 %v471, %v543
  %v616 = vmul.f32 %v472, %v544
  %v617 = vmul.f32 %v473, %v545
  %v618 = vmul.f32 %v474, %v546
  %v619 = vmul.f32 %v475, %v547
  %v620 = vmul.f32 %v476, %v548
  %v621 = vmul.f32 %v477, %v549
  %v622 = vmul.f32 %v478, %v550
  %v623 = vmul.f32 %v479, %v551
  %v624 = vmul.f32 %v480, %v552
  %v625 = vmul.f32 %v481, %v553
  %v626 = vmul.f32 %v482, %v554
  %v627 = vmul.f32 %v483, %v555
  %v628 = vmul.f32 %v484, %v556
  %v629 = vmul.f32 %v485, %v557
  %v630 = vmul.f32 %v486, %v558
  %v631 = vmul.f32 %v487, %v559
  %v632 = vmul.f32 %v488, %v560
  %v633 = vmul.f32 %v489, %v561
  %v634 = vmul.f32 %v490, %v562
  %v635 = vmul.f32 %v491, %v563
  %v636 = vmul.f32 %v492, %v564
  %v637 = vmul.f32 %v493, %v565
  %v638 = vmul.f32 %v494, %v566
  %v639 = vmul.f32 %v495, %v567
  %v640 = vmul.f32 %v496, %v568
  %v641 = vmul.f32 %v497, %v569
  %v642 = vmul.f32 %v498, %v570
  %v643 = vmul.f32 %v499, %v571
  %v644 = vmul.f32 %v500, %v572
  %v645 = vsub.f32 2.0, %v573
  %v646 = vsub.f32 2.0, %v574
  %v647 = vsub.f32 2.0, %v575
  %v648 = vsub.f32 2.0, %v576
  %v649 = vsub.f32 2.0, %v577
  %v650 = vsub.f32 2.0, %v578
  %v651 = vsub.f32 2.0, %v579
  %v652 = vsub.f32 2.0, %v580
  %v653 = vsub.f32 2.0, %v581
  %v654 = vsub.f32 2.0, %v582
  %v655 = vsub.f32 2.0, %v583
  %v656 = vsub.f32 2.0, %v584
  %v657 = vsub.f32 2.0, %v585
  %v658 = vsub.f32 2.0, %v586
  %v659 = vsub.f32 2.0, %v587
  %v660 = vsub.f32 2.0, %v588
  %v661 = vsub.f32 2.0, %v589
  %v662 = vsub.f32 2.0, %v590
  %v663 = vsub.f32 2.0, %v591
  %v664 = vsub.f32 2.0, %v592
  %v665 = vsub.f32 2.0, %v593
  %v666 = vsub.f32 2.0, %v594
  %v667 = vsub.f32 2.0, %v595
  %v668 = vsub.f32 2.0, %v596
  %v669 = vsub.f32 2.0, %v597
  %v670 = vsub.f32 2.0, %v598
  %v671 = vsub.f32 2.0, %v599
  %v672 = vsub.f32 2.0, %v600
  %v673 = vsub.f32 2.0, %v601
  %v674 = vsub.f32 2.0, %v602
  %v675 = vsub.f32 2.0, %v603
  %v676 = vsub.f32 2.0, %v604
  %v677 = vsub.f32 2.0, %v605
  %v678 = vsub.f32 2.0, %v606
  %v679 = vsub.f32 2.0, %v607
  %v680 = vsub.f32 2.0, %v608
  %v681 = vsub.f32 2.0, %v609
  %v682 = vsub.f32 2.0, %v610
  %v683 = vsub.f32 2.0, %v611
  %v684 = vsub.f32 2.0, %v612
  %v685 = vsub.f32 2.0, %v613
  %v686 = vsub.f32 2.0, %v614
  %v687 = vsub.f32 2.0, %v615
  %v688 = vsub.f32 2.0, %v616
  %v689 = vsub.f32 2.0, %v617
  %v690 = vsub.f32 2.0, %v618
  %v691 = vsub.f32 2.0, %v619
  %v692 = vsub.f32 2.0, %v620
  %v693 = vsub.f32 2.0, %v621
  %v694 = vsub.f32 2.0, %v622
  %v695 = vsub.f32 2.0, %v623
  %v696 = vsub.f32 2.0, %v624
  %v697 = vsub.f32 2.0, %v625
  %v698 = vsub.f32 2.0, %v626
  %v699 = vsub.f32 2.0, %v627
  %v700 = vsub.f32 2.0, %v628
  %v701 = vsub.f32 2.0, %v629
  %v702 = vsub.f32 2.0, %v630
  %v703 = vsub.f32 2.0, %v631
  %v704 = vsub.f32 2.0, %v632
  %v705 = vsub.f32 2.0, %v633
  %v706 = vsub.f32 2.0, %v634
  %v707 = vsub.f32 2.0, %v635
  %v708 = vsub.f32 2.0, %v636
  %v709 = vsub.f32 2.0, %v637
  %v710 = vsub.f32 2.0, %v638
  %v711 = vsub.f32 2.0, %v639
  %v712 = vsub.f32 2.0, %v640
  %v713 = vsub.f32 2.0, %v641
  %v714 = vsub.f32 2.0, %v642
  %v715 = vsub.f32 2.0, %v643
  %v716 = vsub.f32 2.0, %v644
  %v717 = vmul.f32 %v501, %v645
  %v718 = vmul.f32 %v502, %v646
  %v719 = vmul.f32 %v503, %v647
  %v720 = vmul.f32 %v504, %v648
  %v721 = vmul.f32 %v505, %v649
  %v722 = vmul.f32 %v506, %v650
  %v723 = vmul.f32 %v507, %v651
  %v724 = vmul.f32 %v508, %v652
  %v725 = vmul.f32 %v509, %v653
  %v726 = vmul.f32 %v510, %v654
  %v727 = vmul.f32 %v511, %v655
  %v728 = vmul.f32 %v512, %v656
  %v729 = vmul.f32 %v513, %v657
  %v730 = vmul.f32 %v514, %v658
  %v731 = vmul.f32 %v515, %v659
  %v732 = vmul.f32 %v516, %v660
  %v733 = vmul.f32 %v517, %v661
  %v734 = vmul.f32 %v518, %v662
  %v735 = vmul.f32 %v519, %v663
  %v736 = vmul.f32 %v520, %v664
  %v737 = vmul.f32 %v521, %v665
  %v738 = vmul.f32 %v522, %v666
  %v739 = vmul.f32 %v523, %v667
  %v740 = vmul.f32 %v524, %v668
  %v741 = vmul.f32 %v525, %v669
  %v742 = vmul.f32 %v526, %v670
  %v743 = vmul.f32 %v527, %v671
  %v744 = vmul.f32 %v528, %v672
  %v745 = vmul.f32 %v529, %v673
  %v746 = vmul.f32 %v530, %v674
  %v747 = vmul.f32 %v531, %v675
  %v748 = vmul.f32 %v532, %v676
  %v749 = vmul.f32 %v533, %v677
  %v750 = vmul.f32 %v534, %v678
  %v751 = vmul.f32 %v535, %v679
  %v752 = vmul.f32 %v536, %v680
  %v753 = vmul.f32 %v537, %v681
  %v754 = vmul.f32 %v538, %v682
  %v755 = vmul.f32 %v539, %v683
  %v756 = vmul.f32 %v540, %v684
  %v757 = vmul.f32 %v541, %v685
  %v758 = vmul.f32 %v542, %v686
  %v759 = vmul.f32 %v543, %v687
  %v760 = vmul.f32 %v544, %v688
  %v761 = vmul.f32 %v545, %v689
  %v762 = vmul.f32 %v546, %v690
  %v763 = vmul.f32 %v547, %v691
  %v764 = vmul.f32 %v548, %v692
  %v765 = vmul.f32 %v549, %v693
  %v766 = vmul.f32 %v550, %v694
  %v767 = vmul.f32 %v551, %v695
  %v768 = vmul.f32 %v552, %v696
  %v769 = vmul.f32 %v553, %v697
  %v770 = vmul.f32 %v554, %v698
  %v771 = vmul.f32 %v555, %v699
  %v772 = vmul.f32 %v556, %v700
  %v773 = vmul.f32 %v557, %v701
  %v774 = vmul.f32 %v558, %v702
  %v775 = vmul.f32 %v559, %v703
  %v776 = vmul.f32 %v560, %v704
  %v777 = vmul.f32 %v561, %v705
  %v778 = vmul.f32 %v562, %v706
  %v779 = vmul.f32 %v563, %v707
  %v780 = vmul.f32 %v564, %v708
  %v781 = vmul.f32 %v565, %v709
  %v782 = vmul.f32 %v566, %v710
  %v783 = vmul.f32 %v567, %v711
  %v784 = vmul.f32 %v568, %v712
  %v785 = vmul.f32 %v569, %v713
  %v786 = vmul.f32 %v570, %v714
  %v787 = vmul.f32 %v571, %v715
  %v788 = vmul.f32 %v572, %v716
  %v789 = vmul.f32 %v285, %v717
  %v790 = vmul.f32 %v286, %v718
  %v791 = vmul.f32 %v287, %v719
  %v792 = vmul.f32 %v288, %v720
  %v793 = vmul.f32 %v289, %v721
  %v794 = vmul.f32 %v290, %v722
  %v795 = vmul.f32 %v291, %v723
  %v796 = vmul.f32 %v292, %v724
  %v797 = vmul.f32 %v293, %v725
  %v798 = vmul.f32 %v294, %v726
  %v799 = vmul.f32 %v295, %v727
  %v800 = vmul.f32 %v296, %v728
  %v801 = vmul.f32 %v297, %v729
  %v802 = vmul.f32 %v298, %v730
  %v803 = vmul.f32 %v299, %v731
  %v804 = vmul.f32 %v300, %v732
  %v805 = vmul.f32 %v301, %v733
  %v806 = vmul.f32 %v302, %v734
  %v807 = vmul.f32 %v303, %v735
  %v808 = vmul.f32 %v304, %v736
  %v809 = vmul.f32 %v305, %v737
  %v810 = vmul.f32 %v306, %v738
  %v811 = vmul.f32 %v307, %v739
  %v812 = vmul.f32 %v308, %v740
  %v813 = vmul.f32 %v309, %v741
  %v814 = vmul.f32 %v310, %v742
  %v815 = vmul.f32 %v311, %v743
  %v816 = vmul.f32 %v312, %v744
  %v817 = vmul.f32 %v313, %v745
  %v818 = vmul.f32 %v314, %v746
  %v819 = vmul.f32 %v315, %v747
  %v820 = vmul.f32 %v316, %v748
  %v821 = vmul.f32 %v317, %v749
  %v822 = vmul.f32 %v318, %v750
  %v823 = vmul.f32 %v319, %v751
  %v824 = vmul.f32 %v320, %v752
  %v825 = vmul.f32 %v321, %v753
  %v826 = vmul.f32 %v322, %v754
  %v827 = vmul.f32 %v323, %v755
  %v828 = vmul.f32 %v324, %v756
  %v829 = vmul.f32 %v325, %v757
  %v830 = vmul.f32 %v326, %v758
  %v831 = vmul.f32 %v327, %v759
  %v832 = vmul.f32 %v328, %v760
  %v833 = vmul.f32 %v329, %v761
  %v834 = vmul.f32 %v330, %v762
  %v835 = vmul.f32 %v331, %v763
  %v836 = vmul.f32 %v332, %v764
  %v837 = vmul.f32 %v333, %v765
  %v838 = vmul.f32 %v334, %v766
  %v839 = vmul.f32 %v335, %v767
  %v840 = vmul.f32 %v336, %v768
  %v841 = vmul.f32 %v337, %v769
  %v842 = vmul.f32 %v338, %v770
  %v843 = vmul.f32 %v339, %v771
  %v844 = vmul.f32 %v340, %v772
  %v845 = vmul.f32 %v341, %v773
  %v846 = vmul.f32 %v342, %v774
  %v847 = vmul.f32 %v343, %v775
  %v848 = vmul.f32 %v344, %v776
  %v849 = vmul.f32 %v345, %v777
  %v850 = vmul.f32 %v346, %v778
  %v851 = vmul.f32 %v347, %v779
  %v852 = vmul.f32 %v348, %v780
  %v853 = vmul.f32 %v349, %v781
  %v854 = vmul.f32 %v350, %v782
  %v855 = vmul.f32 %v351, %v783
  %v856 = vmul.f32 %v352, %v784
  %v857 = vmul.f32 %v353, %v785
  %v858 = vmul.f32 %v354, %v786
  %v859 = vmul.f32 %v355, %v787
  %v860 = vmul.f32 %v356, %v788
  %v861 = vmul.f32 %v213, %v213
  %v862 = vmul.f32 %v214, %v214
  %v863 = vmul.f32 %v215, %v215
  %v864 = vmul.f32 %v216, %v216
  %v865 = vmul.f32 %v217, %v217
  %v866 = vmul.f32 %v218, %v218
  %v867 = vmul.f32 %v219, %v219
  %v868 = vmul.f32 %v220, %v220
  %v869 = vmul.f32 %v221, %v221
  %v870 = vmul.f32 %v222, %v222
  %v871 = vmul.f32 %v223, %v223
  %v872 = vmul.f32 %v224, %v224
  %v873 = vmul.f32 %v225, %v225
  %v874 = vmul.f32 %v226, %v226
  %v875 = vmul.f32 %v227, %v227
  %v876 = vmul.f32 %v228, %v228
  %v877 = vmul.f32 %v229, %v229
  %v878 = vmul.f32 %v230, %v230
  %v879 = vmul.f32 %v231, %v231
  %v880 = vmul.f32 %v232, %v232
  %v881 = vmul.f32 %v233, %v233
  %v882 = vmul.f32 %v234, %v234
  %v883 = vmul.f32 %v235, %v235
  %v884 = vmul.f32 %v236, %v236
  %v885 = vmul.f32 %v237, %v237
  %v886 = vmul.f32 %v238, %v238
  %v887 = vmul.f32 %v239, %v239
  %v888 = vmul.f32 %v240, %v240
  %v889 = vmul.f32 %v241, %v241
  %v890 = vmul.f32 %v242, %v242
  %v891 = vmul.f32 %v243, %v243
  %v892 = vmul.f32 %v244, %v244
  %v893 = vmul.f32 %v245, %v245
  %v894 = vmul.f32 %v246, %v246
  %v895 = vmul.f32 %v247, %v247
  %v896 = vmul.f32 %v248, %v248
  %v897 = vmul.f32 %v249, %v249
  %v898 = vmul.f32 %v250, %v250
  %v899 = vmul.f32 %v251, %v251
  %v900 = vmul.f32 %v252, %v252
  %v901 = vmul.f32 %v253, %v253
  %v902 = vmul.f32 %v254, %v254
  %v903 = vmul.f32 %v255, %v255
  %v904 = vmul.f32 %v256, %v256
  %v905 = vmul.f32 %v257, %v257
  %v906 = vmul.f32 %v258, %v258
  %v907 = vmul.f32 %v259, %v259
  %v908 = vmul.f32 %v260, %v260
  %v909 = vmul.f32 %v261, %v261
  %v910 = vmul.f32 %v262, %v262
  %v911 = vmul.f32 %v263, %v263
  %v912 = vmul.f32 %v264, %v264
  %v913 = vmul.f32 %v265, %v265
  %v914 = vmul.f32 %v266, %v266
  %v915 = vmul.f32 %v267, %v267
  %v916 = vmul.f32 %v268, %v268
  %v917 = vmul.f32 %v269, %v269
  %v918 = vmul.f32 %v270, %v270
  %v919 = vmul.f32 %v271, %v271
  %v920 = vmul.f32 %v272, %v272
  %v921 = vmul.f32 %v273, %v273
  %v922 = vmul.f32 %v274, %v274
  %v923 = vmul.f32 %v275, %v275
  %v924 = vmul.f32 %v276, %v276
  %v925 = vmul.f32 %v277, %v277
  %v926 = vmul.f32 %v278, %v278
  %v927 = vmul.f32 %v279, %v279
  %v928 = vmul.f32 %v280, %v280
  %v929 = vmul.f32 %v281, %v281
  %v930 = vmul.f32 %v282, %v282
  %v931 = vmul.f32 %v283, %v283
  %v932 = vmul.f32 %v284, %v284
  %v933 = vadd.f32 %v861, %v865
  %v934 = vadd.f32 %v933, %v869
  %v935 = vadd.f32 %v934, %v873
  %v936 = vadd.f32 %v935, %v877
  %v937 = vadd.f32 %v936, %v881
  %v938 = vadd.f32 %v937, %v885
  %v939 = vadd.f32 %v938, %v889
  %v940 = vadd.f32 %v939, %v893
  %v941 = vadd.f32 %v940, %v897
  %v942 = vadd.f32 %v941, %v901
  %v943 = vadd.f32 %v942, %v905
  %v944 = vadd.f32 %v943, %v909
  %v945 = vadd.f32 %v944, %v913
  %v946 = vadd.f32 %v945, %v917
  %v947 = vadd.f32 %v946, %v921
  %v948 = vadd.f32 %v947, %v925
  %v949 = vadd.f32 %v948, %v929
  %v950 = vrot.slane %v949, 4
  %v951 = vadd.f32 %v949, %v950
  %v952 = vrot.slane %v951, 2
  %v953 = vadd.f32 %v951, %v952
  %v954 = vrot.slane %v953, 1
  %v955 = vadd.f32 %v953, %v954
  %v956 = vadd.f32 %v862, %v866
  %v957 = vadd.f32 %v956, %v870
  %v958 = vadd.f32 %v957, %v874
  %v959 = vadd.f32 %v958, %v878
  %v960 = vadd.f32 %v959, %v882
  %v961 = vadd.f32 %v960, %v886
  %v962 = vadd.f32 %v961, %v890
  %v963 = vadd.f32 %v962, %v894
  %v964 = vadd.f32 %v963, %v898
  %v965 = vadd.f32 %v964, %v902
  %v966 = vadd.f32 %v965, %v906
  %v967 = vadd.f32 %v966, %v910
  %v968 = vadd.f32 %v967, %v914
  %v969 = vadd.f32 %v968, %v918
  %v970 = vadd.f32 %v969, %v922
  %v971 = vadd.f32 %v970, %v926
  %v972 = vadd.f32 %v971, %v930
  %v973 = vrot.slane %v972, 4
  %v974 = vadd.f32 %v972, %v973
  %v975 = vrot.slane %v974, 2
  %v976 = vadd.f32 %v974, %v975
  %v977 = vrot.slane %v976, 1
  %v978 = vadd.f32 %v976, %v977
  %v979 = vadd.f32 %v863, %v867
  %v980 = vadd.f32 %v979, %v871
  %v981 = vadd.f32 %v980, %v875
  %v982 = vadd.f32 %v981, %v879
  %v983 = vadd.f32 %v982, %v883
  %v984 = vadd.f32 %v983, %v887
  %v985 = vadd.f32 %v984, %v891
  %v986 = vadd.f32 %v985, %v895
  %v987 = vadd.f32 %v986, %v899
  %v988 = vadd.f32 %v987, %v903
  %v989 = vadd.f32 %v988, %v907
  %v990 = vadd.f32 %v989, %v911
  %v991 = vadd.f32 %v990, %v915
  %v992 = vadd.f32 %v991, %v919
  %v993 = vadd.f32 %v992, %v923
  %v994 = vadd.f32 %v993, %v927
  %v995 = vadd.f32 %v994, %v931
  %v996 = vrot.slane %v995, 4
  %v997 = vadd.f32 %v995, %v996
  %v998 = vrot.slane %v997, 2
  %v999 = vadd.f32 %v997, %v998
  %v1000 = vrot.slane %v999, 1
  %v1001 = vadd.f32 %v999, %v1000
  %v1002 = vadd.f32 %v864, %v868
  %v1003 = vadd.f32 %v1002, %v872
  %v1004 = vadd.f32 %v1003, %v876
  %v1005 = vadd.f32 %v1004, %v880
  %v1006 = vadd.f32 %v1005, %v884
  %v1007 = vadd.f32 %v1006, %v888
  %v1008 = vadd.f32 %v1007, %v892
  %v1009 = vadd.f32 %v1008, %v896
  %v1010 = vadd.f32 %v1009, %v900
  %v1011 = vadd.f32 %v1010, %v904
  %v1012 = vadd.f32 %v1011, %v908
  %v1013 = vadd.f32 %v1012, %v912
  %v1014 = vadd.f32 %v1013, %v916
  %v1015 = vadd.f32 %v1014, %v920
  %v1016 = vadd.f32 %v1015, %v924
  %v1017 = vadd.f32 %v1016, %v928
  %v1018 = vadd.f32 %v1017, %v932
  %v1019 = vrot.slane %v1018, 4
  %v1020 = vadd.f32 %v1018, %v1019
  %v1021 = vrot.slane %v1020, 2
  %v1022 = vadd.f32 %v1020, %v1021
  %v1023 = vrot.slane %v1022, 1
  %v1024 = vadd.f32 %v1022, %v1023
  %v1025 = vadd.f32 %v285, %v289
  %v1026 = vadd.f32 %v1025, %v293
  %v1027 = vadd.f32 %v1026, %v297
  %v1028 = vadd.f32 %v1027, %v301
  %v1029 = vadd.f32 %v1028, %v305
  %v1030 = vadd.f32 %v1029, %v309
  %v1031 = vadd.f32 %v1030, %v313
  %v1032 = vadd.f32 %v1031, %v317
  %v1033 = vadd.f32 %v1032, %v321
  %v1034 = vadd.f32 %v1033, %v325
  %v1035 = vadd.f32 %v1034, %v329
  %v1036 = vadd.f32 %v1035, %v333
  %v1037 = vadd.f32 %v1036, %v337
  %v1038 = vadd.f32 %v1037, %v341
  %v1039 = vadd.f32 %v1038, %v345
  %v1040 = vadd.f32 %v1039, %v349
  %v1041 = vadd.f32 %v1040, %v353
  %v1042 = vrot.slane %v1041, 4
  %v1043 = vadd.f32 %v1041, %v1042
  %v1044 = vrot.slane %v1043, 2
  %v1045 = vadd.f32 %v1043, %v1044
  %v1046 = vrot.slane %v1045, 1
  %v1047 = vadd.f32 %v1045, %v1046
  %v1048 = vadd.f32 %v286, %v290
  %v1049 = vadd.f32 %v1048, %v294
  %v1050 = vadd.f32 %v1049, %v298
  %v1051 = vadd.f32 %v1050, %v302
  %v1052 = vadd.f32 %v1051, %v306
  %v1053 = vadd.f32 %v1052, %v310
  %v1054 = vadd.f32 %v1053, %v314
  %v1055 = vadd.f32 %v1054, %v318
  %v1056 = vadd.f32 %v1055, %v322
  %v1057 = vadd.f32 %v1056, %v326
  %v1058 = vadd.f32 %v1057, %v330
  %v1059 = vadd.f32 %v1058, %v334
  %v1060 = vadd.f32 %v1059, %v338
  %v1061 = vadd.f32 %v1060, %v342
  %v1062 = vadd.f32 %v1061, %v346
  %v1063 = vadd.f32 %v1062, %v350
  %v1064 = vadd.f32 %v1063, %v354
  %v1065 = vrot.slane %v1064, 4
  %v1066 = vadd.f32 %v1064, %v1065
  %v1067 = vrot.slane %v1066, 2
  %v1068 = vadd.f32 %v1066, %v1067
  %v1069 = vrot.slane %v1068, 1
  %v1070 = vadd.f32 %v1068, %v1069
  %v1071 = vadd.f32 %v287, %v291
  %v1072 = vadd.f32 %v1071, %v295
  %v1073 = vadd.f32 %v1072, %v299
  %v1074 = vadd.f32 %v1073, %v303
  %v1075 = vadd.f32 %v1074, %v307
  %v1076 = vadd.f32 %v1075, %v311
  %v1077 = vadd.f32 %v1076, %v315
  %v1078 = vadd.f32 %v1077, %v319
  %v1079 = vadd.f32 %v1078, %v323
  %v1080 = vadd.f32 %v1079, %v327
  %v1081 = vadd.f32 %v1080, %v331
  %v1082 = vadd.f32 %v1081, %v335
  %v1083 = vadd.f32 %v1082, %v339
  %v1084 = vadd.f32 %v1083, %v343
  %v1085 = vadd.f32 %v1084, %v347
  %v1086 = vadd.f32 %v1085, %v351
  %v1087 = vadd.f32 %v1086, %v355
  %v1088 = vrot.slane %v1087, 4
  %v1089 = vadd.f32 %v1087, %v1088
  %v1090 = vrot.slane %v1089, 2
  %v1091 = vadd.f32 %v1089, %v1090
  %v1092 = vrot.slane %v1091, 1
  %v1093 = vadd.f32 %v1091, %v1092
  %v1094 = vadd.f32 %v288, %v292
  %v1095 = vadd.f32 %v1094, %v296
  %v1096 = vadd.f32 %v1095, %v300
  %v1097 = vadd.f32 %v1096, %v304
  %v1098 = vadd.f32 %v1097, %v308
  %v1099 = vadd.f32 %v1098, %v312
  %v1100 = vadd.f32 %v1099, %v316
  %v1101 = vadd.f32 %v1100, %v320
  %v1102 = vadd.f32 %v1101, %v324
  %v1103 = vadd.f32 %v1102, %v328
  %v1104 = vadd.f32 %v1103, %v332
  %v1105 = vadd.f32 %v1104, %v336
  %v1106 = vadd.f32 %v1105, %v340
  %v1107 = vadd.f32 %v1106, %v344
  %v1108 = vadd.f32 %v1107, %v348
  %v1109 = vadd.f32 %v1108, %v352
  %v1110 = vadd.f32 %v1109, %v356
  %v1111 = vrot.slane %v1110, 4
  %v1112 = vadd.f32 %v1110, %v1111
  %v1113 = vrot.slane %v1112, 2
  %v1114 = vadd.f32 %v1112, %v1113
  %v1115 = vrot.slane %v1114, 1
  %v1116 = vadd.f32 %v1114, %v1115
  %v1117 = vadd.f32 %v789, %v793
  %v1118 = vadd.f32 %v1117, %v797
  %v1119 = vadd.f32 %v1118, %v801
  %v1120 = vadd.f32 %v1119, %v805
  %v1121 = vadd.f32 %v1120, %v809
  %v1122 = vadd.f32 %v1121, %v813
  %v1123 = vadd.f32 %v1122, %v817
  %v1124 = vadd.f32 %v1123, %v821
  %v1125 = vadd.f32 %v1124, %v825
  %v1126 = vadd.f32 %v1125, %v829
  %v1127 = vadd.f32 %v1126, %v833
  %v1128 = vadd.f32 %v1127, %v837
  %v1129 = vadd.f32 %v1128, %v841
  %v1130 = vadd.f32 %v1129, %v845
  %v1131 = vadd.f32 %v1130, %v849
  %v1132 = vadd.f32 %v1131, %v853
  %v1133 = vadd.f32 %v1132, %v857
  %v1134 = vrot.slane %v1133, 4
  %v1135 = vadd.f32 %v1133, %v1134
  %v1136 = vrot.slane %v1135, 2
  %v1137 = vadd.f32 %v1135, %v1136
  %v1138 = vrot.slane %v1137, 1
  %v1139 = vadd.f32 %v1137, %v1138
  %v1140 = vadd.f32 %v790, %v794
  %v1141 = vadd.f32 %v1140, %v798
  %v1142 = vadd.f32 %v1141, %v802
  %v1143 = vadd.f32 %v1142, %v806
  %v1144 = vadd.f32 %v1143, %v810
  %v1145 = vadd.f32 %v1144, %v814
  %v1146 = vadd.f32 %v1145, %v818
  %v1147 = vadd.f32 %v1146, %v822
  %v1148 = vadd.f32 %v1147, %v826
  %v1149 = vadd.f32 %v1148, %v830
  %v1150 = vadd.f32 %v1149, %v834
  %v1151 = vadd.f32 %v1150, %v838
  %v1152 = vadd.f32 %v1151, %v842
  %v1153 = vadd.f32 %v1152, %v846
  %v1154 = vadd.f32 %v1153, %v850
  %v1155 = vadd.f32 %v1154, %v854
  %v1156 = vadd.f32 %v1155, %v858
  %v1157 = vrot.slane %v1156, 4
  %v1158 = vadd.f32 %v1156, %v1157
  %v1159 = vrot.slane %v1158, 2
  %v1160 = vadd.f32 %v1158, %v1159
  %v1161 = vrot.slane %v1160, 1
  %v1162 = vadd.f32 %v1160, %v1161
  %v1163 = vadd.f32 %v791, %v795
  %v1164 = vadd.f32 %v1163, %v799
  %v1165 = vadd.f32 %v1164, %v803
  %v1166 = vadd.f32 %v1165, %v807
  %v1167 = vadd.f32 %v1166, %v811
  %v1168 = vadd.f32 %v1167, %v815
  %v1169 = vadd.f32 %v1168, %v819
  %v1170 = vadd.f32 %v1169, %v823
  %v1171 = vadd.f32 %v1170, %v827
  %v1172 = vadd.f32 %v1171, %v831
  %v1173 = vadd.f32 %v1172, %v835
  %v1174 = vadd.f32 %v1173, %v839
  %v1175 = vadd.f32 %v1174, %v843
  %v1176 = vadd.f32 %v1175, %v847
  %v1177 = vadd.f32 %v1176, %v851
  %v1178 = vadd.f32 %v1177, %v855
  %v1179 = vadd.f32 %v1178, %v859
  %v1180 = vrot.slane %v1179, 4
  %v1181 = vadd.f32 %v1179, %v1180
  %v1182 = vrot.slane %v1181, 2
  %v1183 = vadd.f32 %v1181, %v1182
  %v1184 = vrot.slane %v1183, 1
  %v1185 = vadd.f32 %v1183, %v1184
  %v1186 = vadd.f32 %v792, %v796
  %v1187 = vadd.f32 %v1186, %v800
  %v1188 = vadd.f32 %v1187, %v804
  %v1189 = vadd.f32 %v1188, %v808
  %v1190 = vadd.f32 %v1189, %v812
  %v1191 = vadd.f32 %v1190, %v816
  %v1192 = vadd.f32 %v1191, %v820
  %v1193 = vadd.f32 %v1192, %v824
  %v1194 = vadd.f32 %v1193, %v828
  %v1195 = vadd.f32 %v1194, %v832
  %v1196 = vadd.f32 %v1195, %v836
  %v1197 = vadd.f32 %v1196, %v840
  %v1198 = vadd.f32 %v1197, %v844
  %v1199 = vadd.f32 %v1198, %v848
  %v1200 = vadd.f32 %v1199, %v852
  %v1201 = vadd.f32 %v1200, %v856
  %v1202 = vadd.f32 %v1201, %v860
  %v1203 = vrot.slane %v1202, 4
  %v1204 = vadd.f32 %v1202, %v1203
  %v1205 = vrot.slane %v1204, 2
  %v1206 = vadd.f32 %v1204, %v1205
  %v1207 = vrot.slane %v1206, 1
  %v1208 = vadd.f32 %v1206, %v1207
  %v1209 = vlaneseq
  %v1210 = vshrl.u32 %v1209, 7
  %vm1211 = vcmp.eq.s32.totalorder %v1210, 0
  %vm1212 = vcmp.eq.s32.totalorder %v1210, 1
  %vm1213 = vcmp.eq.s32.totalorder %v1210, 2
  %v1214 = vsel %vm1213, %v1139, 0.0
  %v1215 = vsel %vm1213, %v1162, 0.0
  %v1216 = vsel %vm1213, %v1185, 0.0
  %v1217 = vsel %vm1213, %v1208, 0.0
  %v1218 = vsel %vm1212, %v1047, %v1214
  %v1219 = vsel %vm1212, %v1070, %v1215
  %v1220 = vsel %vm1212, %v1093, %v1216
  %v1221 = vsel %vm1212, %v1116, %v1217
  %v1222 = vsel %vm1211, %v955, %v1218
  %v1223 = vsel %vm1211, %v978, %v1219
  %v1224 = vsel %vm1211, %v1001, %v1220
  %v1225 = vsel %vm1211, %v1024, %v1221
  %v1226 = vld [vmem:[%s2] sm:$0xff]
  %v1227 = vld [vmem:[%s2 + $0x8] sm:$0xff]
  %v1228 = vld [vmem:[%s2 + $0x10] sm:$0xff]
  %v1229 = vld [vmem:[%s2 + $0x18] sm:$0xff]
  %v1230 = vadd.f32 %v1226, %v1222
  %v1231 = vadd.f32 %v1227, %v1223
  %v1232 = vadd.f32 %v1228, %v1224
  %v1233 = vadd.f32 %v1229, %v1225
  %1234 = vst [vmem:[%s2] sm:$0xff] %v1230
  %1235 = vst [vmem:[%s2 + $0x8] sm:$0xff] %v1231
  %1236 = vst [vmem:[%s2 + $0x10] sm:$0xff] %v1232
  %1237 = vst [vmem:[%s2 + $0x18] sm:$0xff] %v1233
  // Predicated region
  $region14: #{_forward.1} parent=0 // pred_check
    _
  $region15: #{_forward.1} parent=0 // pred_check_branch
    %1239 = sbr.rel (0) target = $region17
  $region16: #{_forward.1} parent=0 // pred_region
    _
  $region17: #{_forward.1} parent=0 // pred_fallthru
    _
  // Predicated region
  $region18: #{_forward.1} parent=0 // pred_check
    _
  $region19: #{_forward.1} parent=0 // pred_check_branch
    %1241 = sbr.rel (0) target = $region21
  $region20: #{_forward.1} parent=0 // pred_region
    _
  $region21: #{_forward.1} parent=0 // pred_fallthru
    _

</llo_original>
